<compile_context>
chip_gen: v7x
topology: tpu7x:2x2x1
jax: 0.10.0
libtpu: 0.0.40
codegen_flags: <defaults>
</compile_context>

<pallas_src>
import functools

import jax
import jax.numpy as jnp
from jax.experimental import pallas as pl
from jax.experimental.pallas import tpu as pltpu


def _round_up(x, m):
    return ((x + m - 1) // m) * m


def _pixel_to_std_kernel(scale_ref, x_ref, o_ref, *, tk, hw, need_mask):
    """Accumulate sum_hw tanh((x-10)/2); finalize out = (sum + HW) * scale.

    scale = 0.5 * tanh(alpha * speed) / HW lives in SMEM; the output block
    (TB, 1) is resident across the HW-chunk axis and used as the accumulator.
    """
    k = pl.program_id(1)

    @pl.when(k == 0)
    def _():
        o_ref[...] = jnp.zeros_like(o_ref)

    # Upcast in-kernel (input stays narrow in HBM); stable sigmoid via tanh.
    t = jnp.tanh((x_ref[...].astype(jnp.float32) - 10.0) * 0.5)
    if need_mask:  # only emitted when HW % TK != 0 (ragged last chunk)
        lane = jax.lax.broadcasted_iota(jnp.int32, t.shape, 1)
        t = jnp.where(k * tk + lane < hw, t, 0.0)
    o_ref[...] += jnp.sum(t, axis=1, keepdims=True)

    @pl.when(k == pl.num_programs(1) - 1)
    def _():
        o_ref[...] = (o_ref[...] + hw) * scale_ref[0, 0]


def pixel_to_std(x, alpha, *, speed=1.0, vmem_block_budget=4 << 20):
    """PixelToSTD forward.  x: (B, 1, H, W), native dtype -> (B, 1) float32."""
    B, C, H, W = x.shape
    assert C == 1, "PixelToSTD expects a single channel"
    HW = H * W

    xf = x.reshape(B, HW)  # channel == 1: metadata-only reshape, native dtype

    itemsize = jnp.dtype(x.dtype).itemsize
    # Sublane packing granularity: 8 rows for f32, 16 for bf16, 32 for int8.
    sub = max(8, 32 // max(itemsize, 1))

    row_bytes = HW * itemsize
    if sub * row_bytes <= vmem_block_budget:
        # Whole HW row per block (full last dim -> exempt from the 128 rule);
        # grow the row tile from the byte budget (small-image / large-B case).
        TK = HW
        TB = max(sub, (vmem_block_budget // row_bytes) // sub * sub)
        TB = min(TB, _round_up(B, sub))
        # Keep >= 2 B-steps when possible (pipelining + v7x megacore sharding).
        TB = min(TB, max(sub, _round_up(pl.cdiv(B, 2), sub)))
    else:
        # Large image: chunk HW, keep VMEM use independent of image size.
        TB = min(_round_up(B, sub), 4 * sub)
        TK = (vmem_block_budget // (TB * itemsize)) // 128 * 128
        TK = max(128, min(TK, _round_up(HW, 128)))
    need_mask = (TK != HW) and (HW % TK != 0)

    nb = pl.cdiv(B, TB)
    nk = pl.cdiv(HW, TK)

    # All per-row constants folded into one SMEM scalar:
    #   out = (sum tanh((x-10)/2) + HW) * 0.5 * tanh(alpha*speed) / HW
    # TODO(synk): ForcedAlpha parameterisation (tanh(alpha*speed)) follows the
    #             Loci repo; only the class name appears in the given snippet.
    scale = (0.5 * jnp.tanh(jnp.asarray(alpha, jnp.float32) * speed) / HW
             ).reshape(1, 1)

    out = pl.pallas_call(
        functools.partial(_pixel_to_std_kernel, tk=TK, hw=HW,
                          need_mask=need_mask),
        out_shape=jax.ShapeDtypeStruct((B, 1), jnp.float32),
        grid=(nb, nk),
        in_specs=[
            pl.BlockSpec(memory_space=pltpu.MemorySpace.SMEM),   # fused scale
            pl.BlockSpec((TB, TK), lambda i, k: (i, k)),         # pixel chunks
        ],
        out_specs=pl.BlockSpec((TB, 1), lambda i, k: (i, 0)),    # acc, resident
        compiler_params=pltpu.CompilerParams(
            dimension_semantics=("parallel", "arbitrary")),
    )(scale, xf)
    return out                                     # 'b c h w -> b c' (c == 1)


if __name__ == "__main__":
    B, C, H, W = 2, 1, 16, 16
    key = jax.random.PRNGKey(0)

    # Inputs spanning a useful sigmoid range around the -10 shift.
    x = 6.0 * jax.random.normal(key, (B, C, H, W), jnp.float32) + 8.0
    # ForcedAlpha parameter (repo init is ~0; nonzero makes the test non-trivial).
    alpha = jnp.float32(1.0)

    fwd = jax.jit(functools.partial(pixel_to_std, speed=1.0))
    out = fwd(x, alpha)
    jax.block_until_ready(out)

    # Pure-JAX reference of the forward semantics.
    ref = jnp.tanh(alpha) * jnp.mean(jax.nn.sigmoid(x - 10.0), axis=(2, 3))
    assert out.shape == (B, C)
    assert bool(jnp.allclose(out, ref, rtol=1e-5, atol=1e-6))
    print("KERNEL_OK")
</pallas_src>

<mosaic_0001>
module attributes {stable_mosaic.version = 11 : i64} {
  func.func @_pixel_to_std_kernel(%arg0: i32, %arg1: i32, %arg2: memref<1x1xf32, #tpu.memory_space<smem>>, %arg3: memref<8x256xf32, #tpu.memory_space<vmem>>, %arg4: memref<8x1xf32, #tpu.memory_space<vmem>>) attributes {dimension_semantics = [#tpu.dimension_semantics<parallel>, #tpu.dimension_semantics<arbitrary>], iteration_bounds = array<i64: 1, 1>, scalar_prefetch = 0 : i64, scratch_operands = 0 : i64, tpu.core_type = #tpu.core_type<tc>, window_params = [{transform_indices = @transform_0, window_bounds = array<i64: 1, 1>}, {transform_indices = @transform_1, window_bounds = array<i64: 8, 256>}, {transform_indices = @transform_2, window_bounds = array<i64: 8, 1>}]} {
    %c0_i32 = arith.constant 0 : i32
    %0 = arith.cmpi eq, %arg1, %c0_i32 : i32
    %1 = arith.extui %0 : i1 to i32
    %c0_i32_0 = arith.constant 0 : i32
    %2 = arith.cmpi ne, %1, %c0_i32_0 : i32
    scf.if %2 {
      %cst_10 = arith.constant 0.000000e+00 : f32
      %17 = vector.broadcast %cst_10 : f32 to vector<8x1xf32>
      %c0_11 = arith.constant 0 : index
      %c0_12 = arith.constant 0 : index
      %18 = vector.load %arg4[%c0_11, %c0_12] : memref<8x1xf32, #tpu.memory_space<vmem>>, vector<8x1xf32>
      tpu.vector_store %arg4[%c0_11, %c0_12], %17 {strides = array<i32>} : memref<8x1xf32, #tpu.memory_space<vmem>>, vector<8x1xf32>,
    } else {
    }
    %c0 = arith.constant 0 : index
    %c0_1 = arith.constant 0 : index
    %3 = vector.load %arg3[%c0, %c0_1] : memref<8x256xf32, #tpu.memory_space<vmem>>, vector<8x256xf32>
    %cst = arith.constant 1.000000e+01 : f32
    %4 = vector.broadcast %cst : f32 to vector<8x256xf32>
    %5 = arith.subf %3, %4 : vector<8x256xf32>
    %cst_2 = arith.constant 5.000000e-01 : f32
    %6 = vector.broadcast %cst_2 : f32 to vector<8x256xf32>
    %7 = arith.mulf %5, %6 : vector<8x256xf32>
    %8 = math.tanh %7 : vector<8x256xf32>
    %c0_3 = arith.constant 0 : index
    %c0_4 = arith.constant 0 : index
    %9 = vector.load %arg4[%c0_3, %c0_4] : memref<8x1xf32, #tpu.memory_space<vmem>>, vector<8x1xf32>
    %cst_5 = arith.constant dense<0.000000e+00> : vector<8xf32>
    %10 = vector.multi_reduction <add>, %8, %cst_5 [1] : vector<8x256xf32> to vector<8xf32>
    %11 = vector.shape_cast %10 : vector<8xf32> to vector<8x1xf32>
    %12 = arith.addf %9, %11 : vector<8x1xf32>
    %c0_6 = arith.constant 0 : index
    %c0_7 = arith.constant 0 : index
    %13 = vector.load %arg4[%c0_6, %c0_7] : memref<8x1xf32, #tpu.memory_space<vmem>>, vector<8x1xf32>
    tpu.vector_store %arg4[%c0_6, %c0_7], %12 {strides = array<i32>} : memref<8x1xf32, #tpu.memory_space<vmem>>, vector<8x1xf32>,
    %c0_i32_8 = arith.constant 0 : i32
    %14 = arith.cmpi eq, %arg1, %c0_i32_8 : i32
    %15 = arith.extui %14 : i1 to i32
    %c0_i32_9 = arith.constant 0 : i32
    %16 = arith.cmpi ne, %15, %c0_i32_9 : i32
    scf.if %16 {
      %c0_10 = arith.constant 0 : index
      %c0_11 = arith.constant 0 : index
      %17 = vector.load %arg4[%c0_10, %c0_11] : memref<8x1xf32, #tpu.memory_space<vmem>>, vector<8x1xf32>
      %cst_12 = arith.constant 2.560000e+02 : f32
      %18 = vector.broadcast %cst_12 : f32 to vector<8x1xf32>
      %19 = arith.addf %17, %18 : vector<8x1xf32>
      %c0_13 = arith.constant 0 : index
      %c0_14 = arith.constant 0 : index
      %20 = memref.load %arg2[%c0_13, %c0_14] : memref<1x1xf32, #tpu.memory_space<smem>>
      %21 = vector.broadcast %20 : f32 to vector<8x1xf32>
      %22 = arith.mulf %19, %21 : vector<8x1xf32>
      %c0_15 = arith.constant 0 : index
      %c0_16 = arith.constant 0 : index
      %23 = vector.load %arg4[%c0_15, %c0_16] : memref<8x1xf32, #tpu.memory_space<vmem>>, vector<8x1xf32>
      tpu.vector_store %arg4[%c0_15, %c0_16], %22 {strides = array<i32>} : memref<8x1xf32, #tpu.memory_space<vmem>>, vector<8x1xf32>,
    } else {
    }
    return
  }
  func.func @transform_0(%arg0: i32, %arg1: i32) -> (i32, i32) {
    %c0_i32 = arith.constant 0 : i32
    %c0_i32_0 = arith.constant 0 : i32
    %c0_i32_1 = arith.constant 0 : i32
    return %c0_i32, %c0_i32_0 : i32, i32
  }
  func.func @transform_1(%arg0: i32, %arg1: i32) -> (i32, i32) {
    %c0_i32 = arith.constant 0 : i32
    return %arg0, %arg1 : i32, i32
  }
  func.func @transform_2(%arg0: i32, %arg1: i32) -> (i32, i32) {
    %c0_i32 = arith.constant 0 : i32
    %c0_i32_0 = arith.constant 0 : i32
    return %arg0, %c0_i32 : i32, i32
  }
}

</mosaic_0001>

<llo_original>
// kernel: pixel_to_std.1
$region0: #{pixel_to_std.1}
  #allocation0 [shape = 'u32[]', space=smem, size = 0x4, offset = 0x4, fixed_abs, tag = 'smem constant byte address 0x4 - core index']
  #allocation1 [shape = 'u32[144,128]{1,0:T(1,128)}', space=vmem, size = 0x12000, scoped, tag = 'internal scratch']
  #allocation2 [shape = 'f32[1,1]{1,0:T(1,128)S(6)}', space=smem, size = 0x200, scoped, tag = 'scoped memory for pixel_to_std.1']
  %s0 = inlined_call_operand.<no memory space> [shape: f32[1,1], index: 0, kind: input, shape index: {}]
  %s1 = inlined_call_operand.vmem [shape: f32[2,256], index: 1, kind: input, shape index: {}]
  %s2 = inlined_call_operand.vmem [shape: f32[2,1], index: 2, kind: output, shape index: {}]
  %s3 = sld [smem:[#allocation0]]
  $region56: #{pixel_to_std.1} parent=0
    _
  %s5 = ssub.s32 1, %s3
  %s6 = scalar_select 0, %s5, %s3
  %7 = sst [smem:[#allocation2]] %s0
  $region1: #{pixel_to_std.1} parent=0
    #allocation3 [shape = 'u8[4096]{0}', space=vmem, size = 0x1000, scoped, tag = 'output window, operand 0, single buffered']
    // Predicated region
    $region2: #{pixel_to_std.1} parent=1 // pred_check
      _
    $region3: #{pixel_to_std.1} parent=1 // pred_check_branch
      %9 = sbr.rel (0) target = $region5
    $region4: #{pixel_to_std.1} parent=1 // pred_region
      _
    $region5: #{pixel_to_std.1} parent=1 // pred_fallthru
      _
    // Predicated region
    $region6: #{pixel_to_std.1} parent=1 // pred_check
      _
    $region7: #{pixel_to_std.1} parent=1 // pred_check_branch
      %11 = sbr.rel (0) target = $region9
    $region8: #{pixel_to_std.1} parent=1 // pred_region
      _
    $region9: #{pixel_to_std.1} parent=1 // pred_fallthru
      _
    %p12 = scmp.eq.s32.totalorder 0, 0
    // Predicated region
    $region10: #{pixel_to_std.1} parent=1 // pred_check
      %p13 = pneg %p12
    $region11: #{pixel_to_std.1} parent=1 // pred_check_branch
      %15 = sbr.rel (%p13) target = $region13
    $region12: #{pixel_to_std.1} parent=1 // pred_region
      %vm16 = vcmask 7168
      %17 = vst.msk [vmem:[#allocation3] sm:$0xff] %vm16, 0.0
    $region13: #{pixel_to_std.1} parent=1 // pred_fallthru
      _
    %v18 = vld [vmem:[%s1] sm:$0xf]
    %v19 = vld [vmem:[%s1 + $0x4] sm:$0xf]
    %v20 = vld [vmem:[%s1 + $0x8] sm:$0xf]
    %v21 = vld [vmem:[%s1 + $0xc] sm:$0xf]
    %v22 = vsub.f32 %v18, 10.0
    %v23 = vsub.f32 %v19, 10.0
    %v24 = vsub.f32 %v20, 10.0
    %v25 = vsub.f32 %v21, 10.0
    %v26 = vmul.f32 %v22, 0.5
    %v27 = vmul.f32 %v23, 0.5
    %v28 = vmul.f32 %v24, 0.5
    %v29 = vmul.f32 %v25, 0.5
    %v30 = vtanh.pop %v26
    %v31 = vtanh.pop %v27
    %v32 = vtanh.pop %v28
    %v33 = vtanh.pop %v29
    %v34 = vld [vmem:[#allocation3] sm:$0xff]
    %v39 = vcombine.low %v30, %v31
    %v40 = vcombine.low %v32, %v33
    %v42 = vunpack.c.l.s4 1983009808
    %v43 = vunpack.c.0.s8 %v42
    %v44 = vlaneseq
    %v45 = vshrl.u32 %v44, 7
    %v46 = vsub.s32 %v43, %v45
    %v47 = vrot.slane %v39, %v46
    %v49 = vunpack.c.l.s4 1983009808
    %v50 = vunpack.c.0.s8 %v49
    %v51 = vlaneseq
    %v52 = vshrl.u32 %v51, 7
    %v53 = vsub.s32 %v50, %v52
    %v54 = vrot.slane %v40, %v53
    %v55 = vcombine.low %v47, %v54
    %v56 = vcombine.high %v47, %v54
    %v59 = vadd.f32 %v55, %v56
    %60 = vadd.xlane.f32.xlu0 %v59
    %v61 = vpop.xlane.xlu0 %60
    %v62 = vadd.f32 %v34, %v61
    %vm63 = vcmask 7168
    %64 = vst.msk [vmem:[#allocation3] sm:$0xff] %vm63, %v62
    // Predicated region
    $region14: #{pixel_to_std.1} parent=1 // pred_check
      %p65 = pneg %p12
    $region15: #{pixel_to_std.1} parent=1 // pred_check_branch
      %67 = sbr.rel (%p65) target = $region17
    $region16: #{pixel_to_std.1} parent=1 // pred_region
      %v68 = vld [vmem:[#allocation3] sm:$0xff]
      %v69 = vadd.f32 %v68, 256.0
      %s70 = sld [smem:[#allocation2]]
      %v71 = vstv %s70
      %v72 = vmul.f32 %v69, %v71
      %73 = vst.msk [vmem:[#allocation3] sm:$0xff] %vm63, %v72
    $region17: #{pixel_to_std.1} parent=1 // pred_fallthru
      _
    // Predicated region
    $region18: #{pixel_to_std.1} parent=1 // pred_check
      _
    $region19: #{pixel_to_std.1} parent=1 // pred_check_branch
      %75 = sbr.rel (0) target = $region21
    $region20: #{pixel_to_std.1} parent=1 // pred_region
      // Predicated region
      $region22: #{pixel_to_std.1} parent=20 // pred_check
        _
      $region23: #{pixel_to_std.1} parent=20 // pred_check_branch
        %77 = sbr.rel (0) target = $region25
      $region24: #{pixel_to_std.1} parent=20 // pred_region
        // Predicated region
        $region26: #{pixel_to_std.1} parent=24 // pred_check
          _
        $region27: #{pixel_to_std.1} parent=24 // pred_check_branch
          %79 = sbr.rel target = $region29
        $region28: #{pixel_to_std.1} parent=24 // pred_region
          // Predicated region
          $region41: #{pixel_to_std.1} parent=28 // pred_check
            _
          $region42: #{pixel_to_std.1} parent=28 // pred_check_branch
            %94 = sbr.rel (0) target = $region44
          $region43: #{pixel_to_std.1} parent=28 // pred_region
            loop: start=0, step=1, limit=1
            $region45: #{pixel_to_std.1} parent=43 // loop_pre_header
              _
            $region46: #{pixel_to_std.1} parent=43 // loop_header
              %s97 = sphi 0, %s101
              %p98 = scmp.ge.s32.totalorder %s97, 1
              %s102 = sphi [#allocation3], [#allocation3]
              %s103 = sphi %s2, %s2
            $region47: #{pixel_to_std.1} parent=43 // loop_header_branch
              %100 = sbr.rel (%p98) target = $region51
            $region48: #{pixel_to_std.1} parent=43 // loop_body
              %v104 = vld [vmem:[%s102] sm:$0x3]
              %105 = vst [vmem:[%s103] sm:$0x3] %v104
            $region49: #{pixel_to_std.1} parent=43 // loop_footer
              %s101 = sadd.s32 1, %s97
            $region50: #{pixel_to_std.1} parent=43 // loop_footer_branch
              %96 = sbr.rel target = $region46
            $region51: #{pixel_to_std.1} parent=43 // loop_exit
              _
          $region44: #{pixel_to_std.1} parent=28 // pred_fallthru
            _
        $region29: #{pixel_to_std.1} parent=24 // pred_fallthru
          _
        // Predicated region
        $region30: #{pixel_to_std.1} parent=24 // pred_check
          _
        $region31: #{pixel_to_std.1} parent=24 // pred_check_branch
          %81 = sbr.rel (0) target = $region33
        $region32: #{pixel_to_std.1} parent=24 // pred_region
          loop: start=0, step=1, limit=1
          $region34: #{pixel_to_std.1} parent=32 // loop_pre_header
            _
          $region35: #{pixel_to_std.1} parent=32 // loop_header
            %s84 = sphi 0, %s88
            %p85 = scmp.ge.s32.totalorder %s84, 1
            %s89 = sphi [#allocation3], [#allocation3]
            %s90 = sphi %s2, %s2
          $region36: #{pixel_to_std.1} parent=32 // loop_header_branch
            %87 = sbr.rel (%p85) target = $region40
          $region37: #{pixel_to_std.1} parent=32 // loop_body
            %v91 = vld [vmem:[%s89] sm:$0x3]
            %92 = vst [vmem:[%s90] sm:$0x3] %v91
          $region38: #{pixel_to_std.1} parent=32 // loop_footer
            %s88 = sadd.s32 1, %s84
          $region39: #{pixel_to_std.1} parent=32 // loop_footer_branch
            %83 = sbr.rel target = $region35
          $region40: #{pixel_to_std.1} parent=32 // loop_exit
            _
        $region33: #{pixel_to_std.1} parent=24 // pred_fallthru
          _
      $region25: #{pixel_to_std.1} parent=20 // pred_fallthru
        _
      %106 = vnop
    $region21: #{pixel_to_std.1} parent=1 // pred_fallthru
      _
    // Predicated region
    $region52: #{pixel_to_std.1} parent=1 // pred_check
      _
    $region53: #{pixel_to_std.1} parent=1 // pred_check_branch
      %108 = sbr.rel (0) target = $region55
    $region54: #{pixel_to_std.1} parent=1 // pred_region
      _
    $region55: #{pixel_to_std.1} parent=1 // pred_fallthru
      _

</llo_original>
